<compile_context>
chip_gen: v6e
topology: v6e:2x2x1
jax: 0.10.0
libtpu: 0.0.40
codegen_flags: <defaults>
</compile_context>

<pallas_src>
import jax
import jax.numpy as jnp
from jax import lax
from jax.experimental import pallas as pl
from jax.experimental.pallas import tpu as pltpu

K = 3                      # conv kernel size (stride 1, padding 1 -> "same")
NEG_SLOPE = 0.01           # torch.nn.LeakyReLU default negative_slope
SUBLANE = 8                # f32 sublane width
LANE = 128
LANE_TARGET = 512          # aim for >=512 lanes per grid step
DOT_DTYPE = jnp.bfloat16   # MXU operand dtype (f32 accumulation kept)

# Tap order (dy, dx), row-major over the 3x3 window.  Must match the column
# order of the im2col weight matrices built in the wrapper.
OFFSETS = tuple((dy, dx) for dy in (-1, 0, 1) for dx in (-1, 0, 1))


def _leaky(x):
    return jnp.where(x > 0, x, NEG_SLOPE * x)


def make_resblock_kernel(W, L, dot_dtype):
    """Kernel factory.  W = image width, L = NB*H*W lanes per grid step."""
    # Lane offset s such that shifted[:, l] = a[:, (l + dy*W + dx) mod L].
    shifts = tuple(((dy * W + dx) % L) for dy, dx in OFFSETS)

    def lane_shift(a, s):
        # Static lane rotation via slice+concat (safe in compiled Mosaic and
        # interpret mode; equivalent to an XLU lane rotate).
        if s == 0:
            return a
        return jnp.concatenate([a[:, s:], a[:, :s]], axis=1)

    def kernel(x_ref, mask_ref, w1_ref, b1_ref, w2_ref, b2_ref, o_ref):
        # x_ref   : (Cp, L)     f32   channels on sublanes, (batch,spatial) on lanes
        # mask_ref: (9*Cp, L)   f32   host-precomputed boundary mask
        # w*_ref  : (Cp, 9*Cp)  bf16  im2col weights (tap-major, channel-minor cols)
        # b*_ref  : (Cp, 1)     f32
        # o_ref   : (Cp, L)     f32
        x = x_ref[...]
        mask = mask_ref[...]

        def im2col(a):
            # a: (Cp, L) f32 -> masked patches (9*Cp, L) in MXU dtype.
            taps = [lane_shift(a, s) for s in shifts]
            patches = jnp.concatenate(taps, axis=0)     # Cp==8 -> sublane aligned
            return (patches * mask).astype(dot_dtype)

        # conv1 (one MXU matmul) + bias + LeakyReLU
        y = jnp.dot(w1_ref[...], im2col(x), preferred_element_type=jnp.float32)
        y = _leaky(y + b1_ref[...])

        # conv2 (one MXU matmul) + bias + residual + LeakyReLU
        z = jnp.dot(w2_ref[...], im2col(y), preferred_element_type=jnp.float32)
        z = _leaky(z + b2_ref[...] + x)

        o_ref[...] = z.astype(o_ref.dtype)

    return kernel


def _conv_weight_to_mat(w, Cp, dtype):
    """OIHW (C,C,3,3) -> (Cp, 9*Cp) im2col matrix, tap-major / channel-minor."""
    Co, Ci, KH, KW = w.shape
    wp = jnp.zeros((Cp, Cp, KH, KW), w.dtype).at[:Co, :Ci].set(w)
    return jnp.transpose(wp, (0, 2, 3, 1)).reshape(Cp, KH * KW * Cp).astype(dtype)


def _boundary_mask(H, W, NB, Cp):
    """(9*Cp, NB*H*W) f32 mask; zero where a tap falls outside its own image."""
    HW = H * W
    L = NB * HW
    p = jnp.arange(L, dtype=jnp.int32) % HW          # per-image flat position
    yy, xx = p // W, p % W
    rows = []
    for dy, dx in OFFSETS:
        m = ((yy + dy >= 0) & (yy + dy < H) & (xx + dx >= 0) & (xx + dx < W))
        rows.append(jnp.broadcast_to(m.astype(jnp.float32)[None, :], (Cp, L)))
    return jnp.concatenate(rows, axis=0)


def resblock_pallas(x, w1, b1, w2, b2):
    """x: (N, C, H, W) f32 NCHW; w*: (C, C, 3, 3) OIHW; b*: (C,)."""
    N, C, H, W = x.shape
    KH, KW = w1.shape[2], w1.shape[3]
    HW = H * W
    Cp = ((C + SUBLANE - 1) // SUBLANE) * SUBLANE    # pad channels to sublanes

    # Fold NB images into each grid step so every step sees a >=512-lane slab.
    nb_target = max(1, pl.cdiv(LANE_TARGET, HW))
    NB = 1
    for d in range(min(N, nb_target), 0, -1):
        if N % d == 0:
            NB = d
            break
    G = N // NB
    L = NB * HW
    assert G == 1 or L % LANE == 0, "lane-axis block must be a multiple of 128"
    # NOTE: at production N use G >= 2 "parallel" steps so v7x's 2 TensorCores
    # are both busy; at this toy shape we prioritize the 512-lane slab (G==1).

    # Layout: (N,C,H,W) -> (Cp, N*HW): padded channels on sublanes, flattened
    # (batch, spatial) on lanes (lane dense, multiple of 128).
    x_cm = jnp.transpose(x, (1, 0, 2, 3)).reshape(C, N * HW)
    x_flat = jnp.zeros((Cp, N * HW), jnp.float32).at[:C].set(x_cm)

    # Host-precomputed constants (hoisted out of the kernel).
    mask = _boundary_mask(H, W, NB, Cp)                   # (9*Cp, L) f32
    w1_mat = _conv_weight_to_mat(w1, Cp, DOT_DTYPE)       # (Cp, 9*Cp) bf16
    w2_mat = _conv_weight_to_mat(w2, Cp, DOT_DTYPE)
    b1c = jnp.zeros((Cp, 1), jnp.float32).at[:C, 0].set(b1)
    b2c = jnp.zeros((Cp, 1), jnp.float32).at[:C, 0].set(b2)

    flops = 2 * 2 * (N * HW) * Cp * (KH * KW * Cp)        # two im2col matmuls
    bytes_accessed = (4 * 2 * Cp * N * HW                 # x in + out
                      + 4 * 9 * Cp * L                    # mask
                      + 2 * 2 * Cp * 9 * Cp               # bf16 weights
                      + 4 * 2 * Cp)                       # biases
    cost = pl.CostEstimate(flops=flops, transcendentals=0,
                           bytes_accessed=bytes_accessed)

    # mask / weights / biases have constant index_maps -> fetched once, not
    # re-DMA'd across grid steps.
    grid_spec = pltpu.PrefetchScalarGridSpec(
        num_scalar_prefetch=0,
        grid=(G,),
        in_specs=[
            pl.BlockSpec((Cp, L), lambda g: (0, g)),
            pl.BlockSpec((9 * Cp, L), lambda g: (0, 0)),
            pl.BlockSpec((Cp, KH * KW * Cp), lambda g: (0, 0)),
            pl.BlockSpec((Cp, 1), lambda g: (0, 0)),
            pl.BlockSpec((Cp, KH * KW * Cp), lambda g: (0, 0)),
            pl.BlockSpec((Cp, 1), lambda g: (0, 0)),
        ],
        out_specs=pl.BlockSpec((Cp, L), lambda g: (0, g)),
    )

    out_flat = pl.pallas_call(
        make_resblock_kernel(W, L, DOT_DTYPE),
        out_shape=jax.ShapeDtypeStruct((Cp, N * HW), jnp.float32),
        grid_spec=grid_spec,
        compiler_params=pltpu.CompilerParams(
            dimension_semantics=("parallel",),
            # Tiny working set here; 32 MiB is safe on every generation (v7x
            # physical VMEM is 64 MiB — size future spatial strips, whose 9x
            # im2col patch term dominates, against that budget).
            vmem_limit_bytes=32 * 1024 * 1024,
        ),
        cost_estimate=cost,
    )(x_flat, mask, w1_mat, b1c, w2_mat, b2c)

    return jnp.transpose(out_flat[:C].reshape(C, N, H, W), (1, 0, 2, 3))


def resblock_reference(x, w1, b1, w2, b2):
    """Pure-JAX reference mirroring the PyTorch module (NCHW / OIHW)."""
    dn = ("NCHW", "OIHW", "NCHW")
    C = x.shape[1]
    y = lax.conv_general_dilated(x, w1, (1, 1), ((1, 1), (1, 1)),
                                 dimension_numbers=dn) + b1.reshape(1, C, 1, 1)
    y = jnp.where(y > 0, y, NEG_SLOPE * y)
    z = lax.conv_general_dilated(y, w2, (1, 1), ((1, 1), (1, 1)),
                                 dimension_numbers=dn) + b2.reshape(1, C, 1, 1)
    z = z + x
    z = jnp.where(z > 0, z, NEG_SLOPE * z)
    return z


if __name__ == "__main__":
    # Small shapes consistent with the module: batch=2, channels=4, spatial=16.
    # (ResBlock requires in_channels == n for the residual add.)
    N, C, H, W = 2, 4, 16, 16

    key = jax.random.PRNGKey(0)
    kx, kw1, kb1, kw2, kb2 = jax.random.split(key, 5)

    x = jax.random.normal(kx, (N, C, H, W), jnp.float32)
    fan_in = C * K * K
    w1 = jax.random.normal(kw1, (C, C, K, K), jnp.float32) / jnp.sqrt(fan_in)
    b1 = jax.random.normal(kb1, (C,), jnp.float32) * 0.1
    w2 = jax.random.normal(kw2, (C, C, K, K), jnp.float32) / jnp.sqrt(fan_in)
    b2 = jax.random.normal(kb2, (C,), jnp.float32) * 0.1

    out = jax.block_until_ready(resblock_pallas(x, w1, b1, w2, b2))
    ref = resblock_reference(x, w1, b1, w2, b2)

    assert out.shape == (N, C, H, W)
    # bf16 MXU operands (f32 accumulation) -> loosened tolerance vs pure f32.
    max_err = jnp.max(jnp.abs(out - ref))
    assert jnp.allclose(out, ref, atol=5e-2, rtol=5e-2), f"max abs err {max_err}"

    print("KERNEL_OK")
</pallas_src>

<mosaic_0001>
module attributes {stable_mosaic.version = 11 : i64} {
  func.func @kernel(%arg0: i32, %arg1: memref<8x512xf32, #tpu.memory_space<vmem>>, %arg2: memref<72x512xf32, #tpu.memory_space<vmem>>, %arg3: memref<8x72xbf16, #tpu.memory_space<vmem>>, %arg4: memref<8x1xf32, #tpu.memory_space<vmem>>, %arg5: memref<8x72xbf16, #tpu.memory_space<vmem>>, %arg6: memref<8x1xf32, #tpu.memory_space<vmem>>, %arg7: memref<8x512xf32, #tpu.memory_space<vmem>>) attributes {dimension_semantics = [#tpu.dimension_semantics<parallel>], iteration_bounds = array<i64: 1>, scalar_prefetch = 0 : i64, scratch_operands = 0 : i64, tpu.core_type = #tpu.core_type<tc>, window_params = [{transform_indices = @transform_0, window_bounds = array<i64: 8, 512>}, {pipeline_mode = #tpu.pipeline_mode<synchronous>, transform_indices = @transform_1, window_bounds = array<i64: 72, 512>}, {pipeline_mode = #tpu.pipeline_mode<synchronous>, transform_indices = @transform_2, window_bounds = array<i64: 8, 72>}, {pipeline_mode = #tpu.pipeline_mode<synchronous>, transform_indices = @transform_3, window_bounds = array<i64: 8, 1>}, {pipeline_mode = #tpu.pipeline_mode<synchronous>, transform_indices = @transform_4, window_bounds = array<i64: 8, 72>}, {pipeline_mode = #tpu.pipeline_mode<synchronous>, transform_indices = @transform_5, window_bounds = array<i64: 8, 1>}, {transform_indices = @transform_6, window_bounds = array<i64: 8, 512>}]} {
    %c0 = arith.constant 0 : index
    %c0_0 = arith.constant 0 : index
    %0 = vector.load %arg1[%c0, %c0_0] : memref<8x512xf32, #tpu.memory_space<vmem>>, vector<8x512xf32>
    %c0_1 = arith.constant 0 : index
    %c0_2 = arith.constant 0 : index
    %1 = vector.load %arg2[%c0_1, %c0_2] : memref<72x512xf32, #tpu.memory_space<vmem>>, vector<72x512xf32>
    %c0_3 = arith.constant 0 : index
    %c0_4 = arith.constant 0 : index
    %2 = vector.load %arg3[%c0_3, %c0_4] : memref<8x72xbf16, #tpu.memory_space<vmem>>, vector<8x72xbf16>
    %3 = vector.extract_strided_slice %0 {offsets = [0, 495], sizes = [8, 17], strides = [1, 1]} : vector<8x512xf32> to vector<8x17xf32>
    %4 = vector.extract_strided_slice %0 {offsets = [0, 0], sizes = [8, 495], strides = [1, 1]} : vector<8x512xf32> to vector<8x495xf32>
    %5 = tpu.concatenate %3, %4 in 1 : vector<8x17xf32>, vector<8x495xf32> -> vector<8x512xf32>
    %6 = vector.extract_strided_slice %0 {offsets = [0, 496], sizes = [8, 16], strides = [1, 1]} : vector<8x512xf32> to vector<8x16xf32>
    %7 = vector.extract_strided_slice %0 {offsets = [0, 0], sizes = [8, 496], strides = [1, 1]} : vector<8x512xf32> to vector<8x496xf32>
    %8 = tpu.concatenate %6, %7 in 1 : vector<8x16xf32>, vector<8x496xf32> -> vector<8x512xf32>
    %9 = vector.extract_strided_slice %0 {offsets = [0, 497], sizes = [8, 15], strides = [1, 1]} : vector<8x512xf32> to vector<8x15xf32>
    %10 = vector.extract_strided_slice %0 {offsets = [0, 0], sizes = [8, 497], strides = [1, 1]} : vector<8x512xf32> to vector<8x497xf32>
    %11 = tpu.concatenate %9, %10 in 1 : vector<8x15xf32>, vector<8x497xf32> -> vector<8x512xf32>
    %12 = vector.extract_strided_slice %0 {offsets = [0, 511], sizes = [8, 1], strides = [1, 1]} : vector<8x512xf32> to vector<8x1xf32>
    %13 = vector.extract_strided_slice %0 {offsets = [0, 0], sizes = [8, 511], strides = [1, 1]} : vector<8x512xf32> to vector<8x511xf32>
    %14 = tpu.concatenate %12, %13 in 1 : vector<8x1xf32>, vector<8x511xf32> -> vector<8x512xf32>
    %15 = vector.extract_strided_slice %0 {offsets = [0, 1], sizes = [8, 511], strides = [1, 1]} : vector<8x512xf32> to vector<8x511xf32>
    %16 = vector.extract_strided_slice %0 {offsets = [0, 0], sizes = [8, 1], strides = [1, 1]} : vector<8x512xf32> to vector<8x1xf32>
    %17 = tpu.concatenate %15, %16 in 1 : vector<8x511xf32>, vector<8x1xf32> -> vector<8x512xf32>
    %18 = vector.extract_strided_slice %0 {offsets = [0, 15], sizes = [8, 497], strides = [1, 1]} : vector<8x512xf32> to vector<8x497xf32>
    %19 = vector.extract_strided_slice %0 {offsets = [0, 0], sizes = [8, 15], strides = [1, 1]} : vector<8x512xf32> to vector<8x15xf32>
    %20 = tpu.concatenate %18, %19 in 1 : vector<8x497xf32>, vector<8x15xf32> -> vector<8x512xf32>
    %21 = vector.extract_strided_slice %0 {offsets = [0, 16], sizes = [8, 496], strides = [1, 1]} : vector<8x512xf32> to vector<8x496xf32>
    %22 = vector.extract_strided_slice %0 {offsets = [0, 0], sizes = [8, 16], strides = [1, 1]} : vector<8x512xf32> to vector<8x16xf32>
    %23 = tpu.concatenate %21, %22 in 1 : vector<8x496xf32>, vector<8x16xf32> -> vector<8x512xf32>
    %24 = vector.extract_strided_slice %0 {offsets = [0, 17], sizes = [8, 495], strides = [1, 1]} : vector<8x512xf32> to vector<8x495xf32>
    %25 = vector.extract_strided_slice %0 {offsets = [0, 0], sizes = [8, 17], strides = [1, 1]} : vector<8x512xf32> to vector<8x17xf32>
    %26 = tpu.concatenate %24, %25 in 1 : vector<8x495xf32>, vector<8x17xf32> -> vector<8x512xf32>
    %27 = tpu.concatenate %5, %8, %11, %14, %0, %17, %20, %23, %26 in 0 : vector<8x512xf32>, vector<8x512xf32>, vector<8x512xf32>, vector<8x512xf32>, vector<8x512xf32>, vector<8x512xf32>, vector<8x512xf32>, vector<8x512xf32>, vector<8x512xf32> -> vector<72x512xf32>
    %28 = arith.mulf %27, %1 : vector<72x512xf32>
    %29 = arith.truncf %28 : vector<72x512xf32> to vector<72x512xbf16>
    %cst = arith.constant dense<0.000000e+00> : vector<8x512xf32>
    %30 = tpu.matmul %2, %29, %cst {dimension_numbers = #tpu.dot_dimension_numbers<[1], [0], [0], [1], [0, 0, 1, 1], [], []>} : vector<8x72xbf16>, vector<72x512xbf16>, vector<8x512xf32> -> vector<8x512xf32>
    %c0_5 = arith.constant 0 : index
    %c0_6 = arith.constant 0 : index
    %31 = vector.load %arg4[%c0_5, %c0_6] : memref<8x1xf32, #tpu.memory_space<vmem>>, vector<8x1xf32>
    %32 = vector.broadcast %31 : vector<8x1xf32> to vector<8x512xf32>
    %33 = arith.addf %30, %32 : vector<8x512xf32>
    %cst_7 = arith.constant 0.000000e+00 : f32
    %34 = vector.broadcast %cst_7 : f32 to vector<8x512xf32>
    %35 = arith.cmpf ogt, %33, %34 : vector<8x512xf32>
    %cst_8 = arith.constant 0.00999999977 : f32
    %36 = vector.broadcast %cst_8 : f32 to vector<8x512xf32>
    %37 = arith.mulf %36, %33 : vector<8x512xf32>
    %38 = arith.select %35, %33, %37 : vector<8x512xi1>, vector<8x512xf32>
    %c0_9 = arith.constant 0 : index
    %c0_10 = arith.constant 0 : index
    %39 = vector.load %arg5[%c0_9, %c0_10] : memref<8x72xbf16, #tpu.memory_space<vmem>>, vector<8x72xbf16>
    %40 = vector.extract_strided_slice %38 {offsets = [0, 495], sizes = [8, 17], strides = [1, 1]} : vector<8x512xf32> to vector<8x17xf32>
    %41 = vector.extract_strided_slice %38 {offsets = [0, 0], sizes = [8, 495], strides = [1, 1]} : vector<8x512xf32> to vector<8x495xf32>
    %42 = tpu.concatenate %40, %41 in 1 : vector<8x17xf32>, vector<8x495xf32> -> vector<8x512xf32>
    %43 = vector.extract_strided_slice %38 {offsets = [0, 496], sizes = [8, 16], strides = [1, 1]} : vector<8x512xf32> to vector<8x16xf32>
    %44 = vector.extract_strided_slice %38 {offsets = [0, 0], sizes = [8, 496], strides = [1, 1]} : vector<8x512xf32> to vector<8x496xf32>
    %45 = tpu.concatenate %43, %44 in 1 : vector<8x16xf32>, vector<8x496xf32> -> vector<8x512xf32>
    %46 = vector.extract_strided_slice %38 {offsets = [0, 497], sizes = [8, 15], strides = [1, 1]} : vector<8x512xf32> to vector<8x15xf32>
    %47 = vector.extract_strided_slice %38 {offsets = [0, 0], sizes = [8, 497], strides = [1, 1]} : vector<8x512xf32> to vector<8x497xf32>
    %48 = tpu.concatenate %46, %47 in 1 : vector<8x15xf32>, vector<8x497xf32> -> vector<8x512xf32>
    %49 = vector.extract_strided_slice %38 {offsets = [0, 511], sizes = [8, 1], strides = [1, 1]} : vector<8x512xf32> to vector<8x1xf32>
    %50 = vector.extract_strided_slice %38 {offsets = [0, 0], sizes = [8, 511], strides = [1, 1]} : vector<8x512xf32> to vector<8x511xf32>
    %51 = tpu.concatenate %49, %50 in 1 : vector<8x1xf32>, vector<8x511xf32> -> vector<8x512xf32>
    %52 = vector.extract_strided_slice %38 {offsets = [0, 1], sizes = [8, 511], strides = [1, 1]} : vector<8x512xf32> to vector<8x511xf32>
    %53 = vector.extract_strided_slice %38 {offsets = [0, 0], sizes = [8, 1], strides = [1, 1]} : vector<8x512xf32> to vector<8x1xf32>
    %54 = tpu.concatenate %52, %53 in 1 : vector<8x511xf32>, vector<8x1xf32> -> vector<8x512xf32>
    %55 = vector.extract_strided_slice %38 {offsets = [0, 15], sizes = [8, 497], strides = [1, 1]} : vector<8x512xf32> to vector<8x497xf32>
    %56 = vector.extract_strided_slice %38 {offsets = [0, 0], sizes = [8, 15], strides = [1, 1]} : vector<8x512xf32> to vector<8x15xf32>
    %57 = tpu.concatenate %55, %56 in 1 : vector<8x497xf32>, vector<8x15xf32> -> vector<8x512xf32>
    %58 = vector.extract_strided_slice %38 {offsets = [0, 16], sizes = [8, 496], strides = [1, 1]} : vector<8x512xf32> to vector<8x496xf32>
    %59 = vector.extract_strided_slice %38 {offsets = [0, 0], sizes = [8, 16], strides = [1, 1]} : vector<8x512xf32> to vector<8x16xf32>
    %60 = tpu.concatenate %58, %59 in 1 : vector<8x496xf32>, vector<8x16xf32> -> vector<8x512xf32>
    %61 = vector.extract_strided_slice %38 {offsets = [0, 17], sizes = [8, 495], strides = [1, 1]} : vector<8x512xf32> to vector<8x495xf32>
    %62 = vector.extract_strided_slice %38 {offsets = [0, 0], sizes = [8, 17], strides = [1, 1]} : vector<8x512xf32> to vector<8x17xf32>
    %63 = tpu.concatenate %61, %62 in 1 : vector<8x495xf32>, vector<8x17xf32> -> vector<8x512xf32>
    %64 = tpu.concatenate %42, %45, %48, %51, %38, %54, %57, %60, %63 in 0 : vector<8x512xf32>, vector<8x512xf32>, vector<8x512xf32>, vector<8x512xf32>, vector<8x512xf32>, vector<8x512xf32>, vector<8x512xf32>, vector<8x512xf32>, vector<8x512xf32> -> vector<72x512xf32>
    %65 = arith.mulf %64, %1 : vector<72x512xf32>
    %66 = arith.truncf %65 : vector<72x512xf32> to vector<72x512xbf16>
    %cst_11 = arith.constant dense<0.000000e+00> : vector<8x512xf32>
    %67 = tpu.matmul %39, %66, %cst_11 {dimension_numbers = #tpu.dot_dimension_numbers<[1], [0], [0], [1], [0, 0, 1, 1], [], []>} : vector<8x72xbf16>, vector<72x512xbf16>, vector<8x512xf32> -> vector<8x512xf32>
    %c0_12 = arith.constant 0 : index
    %c0_13 = arith.constant 0 : index
    %68 = vector.load %arg6[%c0_12, %c0_13] : memref<8x1xf32, #tpu.memory_space<vmem>>, vector<8x1xf32>
    %69 = vector.broadcast %68 : vector<8x1xf32> to vector<8x512xf32>
    %70 = arith.addf %67, %69 : vector<8x512xf32>
    %71 = arith.addf %70, %0 : vector<8x512xf32>
    %cst_14 = arith.constant 0.000000e+00 : f32
    %72 = vector.broadcast %cst_14 : f32 to vector<8x512xf32>
    %73 = arith.cmpf ogt, %71, %72 : vector<8x512xf32>
    %cst_15 = arith.constant 0.00999999977 : f32
    %74 = vector.broadcast %cst_15 : f32 to vector<8x512xf32>
    %75 = arith.mulf %74, %71 : vector<8x512xf32>
    %76 = arith.select %73, %71, %75 : vector<8x512xi1>, vector<8x512xf32>
    %c0_16 = arith.constant 0 : index
    %c0_17 = arith.constant 0 : index
    %77 = vector.load %arg7[%c0_16, %c0_17] : memref<8x512xf32, #tpu.memory_space<vmem>>, vector<8x512xf32>
    tpu.vector_store %arg7[%c0_16, %c0_17], %76 {strides = array<i32>} : memref<8x512xf32, #tpu.memory_space<vmem>>, vector<8x512xf32>,
    return
  }
  func.func @transform_0(%arg0: i32) -> (i32, i32) {
    %c0_i32 = arith.constant 0 : i32
    %c0_i32_0 = arith.constant 0 : i32
    return %c0_i32, %arg0 : i32, i32
  }
  func.func @transform_1(%arg0: i32) -> (i32, i32) {
    %c0_i32 = arith.constant 0 : i32
    %c0_i32_0 = arith.constant 0 : i32
    %c0_i32_1 = arith.constant 0 : i32
    return %c0_i32, %c0_i32_0 : i32, i32
  }
  func.func @transform_2(%arg0: i32) -> (i32, i32) {
    %c0_i32 = arith.constant 0 : i32
    %c0_i32_0 = arith.constant 0 : i32
    %c0_i32_1 = arith.constant 0 : i32
    return %c0_i32, %c0_i32_0 : i32, i32
  }
  func.func @transform_3(%arg0: i32) -> (i32, i32) {
    %c0_i32 = arith.constant 0 : i32
    %c0_i32_0 = arith.constant 0 : i32
    %c0_i32_1 = arith.constant 0 : i32
    return %c0_i32, %c0_i32_0 : i32, i32
  }
  func.func @transform_4(%arg0: i32) -> (i32, i32) {
    %c0_i32 = arith.constant 0 : i32
    %c0_i32_0 = arith.constant 0 : i32
    %c0_i32_1 = arith.constant 0 : i32
    return %c0_i32, %c0_i32_0 : i32, i32
  }
  func.func @transform_5(%arg0: i32) -> (i32, i32) {
    %c0_i32 = arith.constant 0 : i32
    %c0_i32_0 = arith.constant 0 : i32
    %c0_i32_1 = arith.constant 0 : i32
    return %c0_i32, %c0_i32_0 : i32, i32
  }
  func.func @transform_6(%arg0: i32) -> (i32, i32) {
    %c0_i32 = arith.constant 0 : i32
    %c0_i32_0 = arith.constant 0 : i32
    return %c0_i32, %arg0 : i32, i32
  }
}

</mosaic_0001>

<llo_original>
// kernel: tpu_custom_call.1
$region0: #{tpu_custom_call.1}
  #allocation0 [shape = 'u32[]', space=smem, size = 0x4, offset = 0x4, fixed_abs, tag = 'smem constant byte address 0x4 - core index']
  #allocation1 [shape = 'u32[144,128]{1,0:T(1,128)}', space=vmem, size = 0x12000, scoped, tag = 'internal scratch']
  %s0 = inlined_call_operand.hbm [shape: f32[8,512], index: 0, kind: input, shape index: {}]
  %s1 = inlined_call_operand.hbm [shape: f32[72,512], index: 1, kind: input, shape index: {}]
  %s2 = inlined_call_operand.vmem [shape: bf16[8,72], index: 2, kind: input, shape index: {}]
  %s3 = inlined_call_operand.vmem [shape: f32[8,1], index: 3, kind: input, shape index: {}]
  %s4 = inlined_call_operand.vmem [shape: bf16[8,72], index: 4, kind: input, shape index: {}]
  %s5 = inlined_call_operand.vmem [shape: f32[8,1], index: 5, kind: input, shape index: {}]
  %s6 = inlined_call_operand.hbm [shape: f32[8,512], index: 6, kind: output, shape index: {}]
  %s7 = sld [smem:[#allocation0]]
  $region42: #{tpu_custom_call.1} parent=0
    _
  %s9 = ssub.s32 1, %s7
  %s10 = scalar_select 0, %s9, %s7
  $region1: #{tpu_custom_call.1} parent=0
    #allocation2 [shape = 'u8[16384]{0}', space=vmem, size = 0x4000, scoped, tag = 'input window, operand 0, single buffered']
    #allocation3 [shape = 's32[1]{0}', space=sflag, size = 0x4, scoped, tag = 'scoped memory for tpu_custom_call.1']
    #allocation4 [shape = 's32[1]{0}', space=sflag, size = 0x4, scoped, tag = 'scoped memory for tpu_custom_call.1']
    #allocation5 [shape = 'u8[147456]{0}', space=vmem, size = 0x24000, scoped, tag = 'input window, operand 1, single buffered']
    #allocation6 [shape = 's32[1]{0}', space=sflag, size = 0x4, scoped, tag = 'scoped memory for tpu_custom_call.1']
    #allocation7 [shape = 'u8[16384]{0}', space=vmem, size = 0x4000, scoped, tag = 'output window, operand 0, single buffered']
    %11 = vsyncpa [#allocation3], 0
    %12 = vsyncpa [#allocation6], 0
    %13 = vsyncpa [#allocation4], 0
    // Predicated region
    $region2: #{tpu_custom_call.1} parent=1 // pred_check
      _
    $region3: #{tpu_custom_call.1} parent=1 // pred_check_branch
      %15 = sbr.rel (0) target = $region5
    $region4: #{tpu_custom_call.1} parent=1 // pred_region
      %s17 = ssub.s32 512, 512
      %18 = vsyncadd [#allocation3], %s17
      %s20 = sshll.u32 [#allocation2], 4
      %s21 = int_to_ptr.vmem [resolvable:$true] %s20
      %23 = dma.hbm_to_vmem [thread:$0]  %s0, 512, %s21, [#allocation3]
    $region5: #{tpu_custom_call.1} parent=1 // pred_fallthru
      _
    // Predicated region
    $region6: #{tpu_custom_call.1} parent=1 // pred_check
      _
    $region7: #{tpu_custom_call.1} parent=1 // pred_check_branch
      %25 = sbr.rel (0) target = $region9
    $region8: #{tpu_custom_call.1} parent=1 // pred_region
      %s27 = ssub.s32 4608, 4608
      %28 = vsyncadd [#allocation6], %s27
      %s29 = sshll.u32 [#allocation5], 4
      %s30 = int_to_ptr.vmem [resolvable:$true] %s29
      %35 = dma.hbm_to_vmem [thread:$0]  %s1, 4608, %s30, [#allocation6], 512, 512, 32
    $region9: #{tpu_custom_call.1} parent=1 // pred_fallthru
      _
    // Predicated region
    $region10: #{tpu_custom_call.1} parent=1 // pred_check
      _
    $region11: #{tpu_custom_call.1} parent=1 // pred_check_branch
      %37 = sbr.rel (0) target = $region13
    $region12: #{tpu_custom_call.1} parent=1 // pred_region
      _
    $region13: #{tpu_custom_call.1} parent=1 // pred_fallthru
      _
    // Predicated region
    $region14: #{tpu_custom_call.1} parent=1 // pred_check
      _
    $region15: #{tpu_custom_call.1} parent=1 // pred_check_branch
      %39 = sbr.rel (0) target = $region17
    $region16: #{tpu_custom_call.1} parent=1 // pred_region
      _
    $region17: #{tpu_custom_call.1} parent=1 // pred_fallthru
      _
    // Predicated region
    $region18: #{tpu_custom_call.1} parent=1 // pred_check
      _
    $region19: #{tpu_custom_call.1} parent=1 // pred_check_branch
      %41 = sbr.rel (0) target = $region21
    $region20: #{tpu_custom_call.1} parent=1 // pred_region
      _
    $region21: #{tpu_custom_call.1} parent=1 // pred_fallthru
      _
    // Predicated region
    $region22: #{tpu_custom_call.1} parent=1 // pred_check
      _
    $region23: #{tpu_custom_call.1} parent=1 // pred_check_branch
      %43 = sbr.rel (0) target = $region25
    $region24: #{tpu_custom_call.1} parent=1 // pred_region
      _
    $region25: #{tpu_custom_call.1} parent=1 // pred_fallthru
      _
    // Predicated region
    $region26: #{tpu_custom_call.1} parent=1 // pred_check
      _
    $region27: #{tpu_custom_call.1} parent=1 // pred_check_branch
      %45 = sbr.rel (0) target = $region29
    $region28: #{tpu_custom_call.1} parent=1 // pred_region
      %46 = dma.done [#allocation3], 512
    $region29: #{tpu_custom_call.1} parent=1 // pred_fallthru
      _
    // Predicated region
    $region30: #{tpu_custom_call.1} parent=1 // pred_check
      _
    $region31: #{tpu_custom_call.1} parent=1 // pred_check_branch
      %48 = sbr.rel (0) target = $region33
    $region32: #{tpu_custom_call.1} parent=1 // pred_region
      %49 = dma.done [#allocation6], 4608
    $region33: #{tpu_custom_call.1} parent=1 // pred_fallthru
      _
    %v51 = vld [vmem:[#allocation2] sm:$0xff]
    %v52 = vld [vmem:[#allocation2 + $0x8] sm:$0xff]
    %v53 = vld [vmem:[#allocation2 + $0x10] sm:$0xff]
    %v54 = vld [vmem:[#allocation2 + $0x18] sm:$0xff]
    %v55 = vld [vmem:[#allocation5] sm:$0xff]
    %v56 = vld [vmem:[#allocation5 + $0x8] sm:$0xff]
    %v57 = vld [vmem:[#allocation5 + $0x10] sm:$0xff]
    %v58 = vld [vmem:[#allocation5 + $0x18] sm:$0xff]
    %v59 = vld [vmem:[#allocation5 + $0x20] sm:$0xff]
    %v60 = vld [vmem:[#allocation5 + $0x28] sm:$0xff]
    %v61 = vld [vmem:[#allocation5 + $0x30] sm:$0xff]
    %v62 = vld [vmem:[#allocation5 + $0x38] sm:$0xff]
    %v63 = vld [vmem:[#allocation5 + $0x40] sm:$0xff]
    %v64 = vld [vmem:[#allocation5 + $0x48] sm:$0xff]
    %v65 = vld [vmem:[#allocation5 + $0x50] sm:$0xff]
    %v66 = vld [vmem:[#allocation5 + $0x58] sm:$0xff]
    %v67 = vld [vmem:[#allocation5 + $0x60] sm:$0xff]
    %v68 = vld [vmem:[#allocation5 + $0x68] sm:$0xff]
    %v69 = vld [vmem:[#allocation5 + $0x70] sm:$0xff]
    %v70 = vld [vmem:[#allocation5 + $0x78] sm:$0xff]
    %v71 = vld [vmem:[#allocation5 + $0x80] sm:$0xff]
    %v72 = vld [vmem:[#allocation5 + $0x88] sm:$0xff]
    %v73 = vld [vmem:[#allocation5 + $0x90] sm:$0xff]
    %v74 = vld [vmem:[#allocation5 + $0x98] sm:$0xff]
    %v75 = vld [vmem:[#allocation5 + $0xa0] sm:$0xff]
    %v76 = vld [vmem:[#allocation5 + $0xa8] sm:$0xff]
    %v77 = vld [vmem:[#allocation5 + $0xb0] sm:$0xff]
    %v78 = vld [vmem:[#allocation5 + $0xb8] sm:$0xff]
    %v79 = vld [vmem:[#allocation5 + $0xc0] sm:$0xff]
    %v80 = vld [vmem:[#allocation5 + $0xc8] sm:$0xff]
    %v81 = vld [vmem:[#allocation5 + $0xd0] sm:$0xff]
    %v82 = vld [vmem:[#allocation5 + $0xd8] sm:$0xff]
    %v83 = vld [vmem:[#allocation5 + $0xe0] sm:$0xff]
    %v84 = vld [vmem:[#allocation5 + $0xe8] sm:$0xff]
    %v85 = vld [vmem:[#allocation5 + $0xf0] sm:$0xff]
    %v86 = vld [vmem:[#allocation5 + $0xf8] sm:$0xff]
    %v87 = vld [vmem:[#allocation5 + $0x100] sm:$0xff]
    %v88 = vld [vmem:[#allocation5 + $0x108] sm:$0xff]
    %v89 = vld [vmem:[#allocation5 + $0x110] sm:$0xff]
    %v90 = vld [vmem:[#allocation5 + $0x118] sm:$0xff]
    %v91 = vld [vmem:[%s2] sm:$0xf]
    %93 = vrot.lane.b32.xlu0 %v54, 17
    %v94 = vpop.permute.xlu0 %93
    %99 = vrot.lane.b32.xlu0 %v51, 17
    %v100 = vpop.permute.xlu0 %99
    %101 = vrot.lane.b32.xlu0 %v52, 17
    %v102 = vpop.permute.xlu0 %101
    %103 = vrot.lane.b32.xlu0 %v53, 17
    %v104 = vpop.permute.xlu0 %103
    %vm105 = vcmask 138240
    %v106 = vsel %vm105, %v100, %v102
    %v107 = vsel %vm105, %v102, %v104
    %v108 = vsel %vm105, %v104, %v94
    %v113 = vsel %vm105, %v94, %v100
    %114 = vrot.lane.b32.xlu0 %v54, 16
    %v115 = vpop.permute.xlu0 %114
    %117 = vrot.lane.b32.xlu0 %v51, 16
    %v118 = vpop.permute.xlu0 %117
    %119 = vrot.lane.b32.xlu0 %v52, 16
    %v120 = vpop.permute.xlu0 %119
    %121 = vrot.lane.b32.xlu0 %v53, 16
    %v122 = vpop.permute.xlu0 %121
    %vm123 = vcmask 130048
    %v124 = vsel %vm123, %v118, %v120
    %v125 = vsel %vm123, %v120, %v122
    %v126 = vsel %vm123, %v122, %v115
    %v131 = vsel %vm123, %v115, %v118
    %132 = vrot.lane.b32.xlu0 %v54, 15
    %v133 = vpop.permute.xlu0 %132
    %135 = vrot.lane.b32.xlu0 %v51, 15
    %v136 = vpop.permute.xlu0 %135
    %137 = vrot.lane.b32.xlu0 %v52, 15
    %v138 = vpop.permute.xlu0 %137
    %139 = vrot.lane.b32.xlu0 %v53, 15
    %v140 = vpop.permute.xlu0 %139
    %vm141 = vcmask 121856
    %v142 = vsel %vm141, %v136, %v138
    %v143 = vsel %vm141, %v138, %v140
    %v144 = vsel %vm141, %v140, %v133
    %v149 = vsel %vm141, %v133, %v136
    %150 = vrot.lane.b32.xlu0 %v54, 1
    %v151 = vpop.permute.xlu0 %150
    %153 = vrot.lane.b32.xlu0 %v51, 1
    %v154 = vpop.permute.xlu0 %153
    %155 = vrot.lane.b32.xlu0 %v52, 1
    %v156 = vpop.permute.xlu0 %155
    %157 = vrot.lane.b32.xlu0 %v53, 1
    %v158 = vpop.permute.xlu0 %157
    %vm159 = vcmask 7168
    %v160 = vsel %vm159, %v154, %v156
    %v161 = vsel %vm159, %v156, %v158
    %v162 = vsel %vm159, %v158, %v151
    %v167 = vsel %vm159, %v151, %v154
    %168 = vrot.lane.b32.xlu0 %v51, 127
    %v169 = vpop.permute.xlu0 %168
    %170 = vrot.lane.b32.xlu0 %v52, 127
    %v171 = vpop.permute.xlu0 %170
    %172 = vrot.lane.b32.xlu0 %v53, 127
    %v173 = vpop.permute.xlu0 %172
    %174 = vrot.lane.b32.xlu0 %v54, 127
    %v175 = vpop.permute.xlu0 %174
    %vm176 = vcmask 1039360
    %v177 = vsel %vm176, %v169, %v171
    %v178 = vsel %vm176, %v171, %v173
    %v179 = vsel %vm176, %v173, %v175
    %v185 = vsel %vm176, %v175, %v169
    %186 = vrot.lane.b32.xlu0 %v51, 113
    %v187 = vpop.permute.xlu0 %186
    %188 = vrot.lane.b32.xlu0 %v52, 113
    %v189 = vpop.permute.xlu0 %188
    %190 = vrot.lane.b32.xlu0 %v53, 113
    %v191 = vpop.permute.xlu0 %190
    %192 = vrot.lane.b32.xlu0 %v54, 113
    %v193 = vpop.permute.xlu0 %192
    %vm194 = vcmask 924672
    %v195 = vsel %vm194, %v187, %v189
    %v196 = vsel %vm194, %v189, %v191
    %v197 = vsel %vm194, %v191, %v193
    %v203 = vsel %vm194, %v193, %v187
    %204 = vrot.lane.b32.xlu0 %v51, 112
    %v205 = vpop.permute.xlu0 %204
    %206 = vrot.lane.b32.xlu0 %v52, 112
    %v207 = vpop.permute.xlu0 %206
    %208 = vrot.lane.b32.xlu0 %v53, 112
    %v209 = vpop.permute.xlu0 %208
    %210 = vrot.lane.b32.xlu0 %v54, 112
    %v211 = vpop.permute.xlu0 %210
    %vm212 = vcmask 916480
    %v213 = vsel %vm212, %v205, %v207
    %v214 = vsel %vm212, %v207, %v209
    %v215 = vsel %vm212, %v209, %v211
    %v221 = vsel %vm212, %v211, %v205
    %222 = vrot.lane.b32.xlu0 %v51, 111
    %v223 = vpop.permute.xlu0 %222
    %224 = vrot.lane.b32.xlu0 %v52, 111
    %v225 = vpop.permute.xlu0 %224
    %226 = vrot.lane.b32.xlu0 %v53, 111
    %v227 = vpop.permute.xlu0 %226
    %228 = vrot.lane.b32.xlu0 %v54, 111
    %v229 = vpop.permute.xlu0 %228
    %vm230 = vcmask 908288
    %v231 = vsel %vm230, %v223, %v225
    %v232 = vsel %vm230, %v225, %v227
    %v233 = vsel %vm230, %v227, %v229
    %v239 = vsel %vm230, %v229, %v223
    %v240 = vmul.f32 %v113, %v55
    %v241 = vmul.f32 %v106, %v56
    %v242 = vmul.f32 %v107, %v57
    %v243 = vmul.f32 %v108, %v58
    %v244 = vmul.f32 %v131, %v59
    %v245 = vmul.f32 %v124, %v60
    %v246 = vmul.f32 %v125, %v61
    %v247 = vmul.f32 %v126, %v62
    %v248 = vmul.f32 %v149, %v63
    %v249 = vmul.f32 %v142, %v64
    %v250 = vmul.f32 %v143, %v65
    %v251 = vmul.f32 %v144, %v66
    %v252 = vmul.f32 %v167, %v67
    %v253 = vmul.f32 %v160, %v68
    %v254 = vmul.f32 %v161, %v69
    %v255 = vmul.f32 %v162, %v70
    %v256 = vmul.f32 %v51, %v71
    %v257 = vmul.f32 %v52, %v72
    %v258 = vmul.f32 %v53, %v73
    %v259 = vmul.f32 %v54, %v74
    %v260 = vmul.f32 %v177, %v75
    %v261 = vmul.f32 %v178, %v76
    %v262 = vmul.f32 %v179, %v77
    %v263 = vmul.f32 %v185, %v78
    %v264 = vmul.f32 %v195, %v79
    %v265 = vmul.f32 %v196, %v80
    %v266 = vmul.f32 %v197, %v81
    %v267 = vmul.f32 %v203, %v82
    %v268 = vmul.f32 %v213, %v83
    %v269 = vmul.f32 %v214, %v84
    %v270 = vmul.f32 %v215, %v85
    %v271 = vmul.f32 %v221, %v86
    %v272 = vmul.f32 %v231, %v87
    %v273 = vmul.f32 %v232, %v88
    %v274 = vmul.f32 %v233, %v89
    %v275 = vmul.f32 %v239, %v90
    %v276 = vpack.c.bf16 %v244, %v240
    %v277 = vpack.c.bf16 %v245, %v241
    %v278 = vpack.c.bf16 %v246, %v242
    %v279 = vpack.c.bf16 %v247, %v243
    %v280 = vpack.c.bf16 %v252, %v248
    %v281 = vpack.c.bf16 %v253, %v249
    %v282 = vpack.c.bf16 %v254, %v250
    %v283 = vpack.c.bf16 %v255, %v251
    %v284 = vpack.c.bf16 %v260, %v256
    %v285 = vpack.c.bf16 %v261, %v257
    %v286 = vpack.c.bf16 %v262, %v258
    %v287 = vpack.c.bf16 %v263, %v259
    %v288 = vpack.c.bf16 %v268, %v264
    %v289 = vpack.c.bf16 %v269, %v265
    %v290 = vpack.c.bf16 %v270, %v266
    %v291 = vpack.c.bf16 %v271, %v267
    %v292 = vpack.c.bf16 %v272, %v272
    %v293 = vpack.c.bf16 %v273, %v273
    %v294 = vpack.c.bf16 %v274, %v274
    %v295 = vpack.c.bf16 %v275, %v275
    %v296 = vld [vmem:[%s3] sm:$0xff]
    %298 = vset.pattern.permute.xlu0 0
    %299 = vperm.xlu0 %298, %v296
    %v300 = vpop.permute.xlu0 %299
    %vm302 = vcmask 588800
    %v304 = vsel %vm302, %v91, 0
    %vm306 = vcmask 1043456
    %v308 = vsel %vm306, %v292, 0
    %v311 = vsel %vm306, %v293, 0
    %v314 = vsel %vm306, %v294, 0
    %v317 = vsel %vm306, %v295, 0
    %319 = vmatprep.subr.bf16.mxu0 0
    %320 = vmatpush1.bf16.msra.mxu0 0
    %321 = vmatprep.subr.bf16.mxu0 0
    %322 = vmatpush1.bf16.msra.mxu0 0
    %323 = vmatprep.subr.bf16.mxu0 0
    %324 = vmatpush1.bf16.msra.mxu0 0
    %325 = vmatprep.subr.bf16.mxu0 %v311
    %326 = vmatpush1.bf16.msra.mxu0 %v308
    %327 = vmatprep.subr.bf16.mxu0 %v289
    %328 = vmatpush1.bf16.msra.mxu0 %v288
    %329 = vmatprep.subr.bf16.mxu0 %v285
    %330 = vmatpush1.bf16.msra.mxu0 %v284
    %331 = vmatprep.subr.bf16.mxu0 %v281
    %332 = vmatpush1.bf16.msra.mxu0 %v280
    %333 = vmatprep.subr.bf16.mxu0 %v277
    %334 = vmatpush1.bf16.msra.mxu0 %v276
    %335 = vmatprep.subr.bf16.mxu0 0
    %336 = vmatpush2.bf16.msra.mxu0 0
    %337 = vmatprep.subr.bf16.mxu0 0
    %338 = vmatpush2.bf16.msra.mxu0 0
    %339 = vmatprep.subr.bf16.mxu0 0
    %340 = vmatpush2.bf16.msra.mxu0 0
    %341 = vmatprep.subr.bf16.mxu0 0
    %342 = vmatpush2.bf16.msra.mxu0 0
    %343 = vmatprep.subr.bf16.mxu0 0
    %344 = vmatpush2.bf16.msra.mxu0 0
    %345 = vmatprep.subr.bf16.mxu0 0
    %346 = vmatpush2.bf16.msra.mxu0 0
    %347 = vmatprep.subr.bf16.mxu0 0
    %348 = vmatpush2.bf16.msra.mxu0 0
    %349 = vmatprep.subr.bf16.mxu0 0
    %350 = vmatpush2.bf16.msra.mxu0 0
    %351 = vmatprep.mubr.bf16.mxu0 0
    %352 = vmatmul.mubr.bf16.gmra.mxu0 %v304
    %v353 = vpop.f32.mrf.mxu0
    %v354 = vadd.f32 %v300, %v353
    %v355 = vpop.f32.mrf.mxu0
    %v356 = vadd.f32 %v300, %v355
    %v357 = vpop.f32.mrf.mxu0
    %v358 = vpop.f32.mrf.mxu0
    %359 = vdwg.mxu0
    %360 = vmatprep.subr.bf16.mxu0 0
    %361 = vmatpush1.bf16.msra.mxu0 0
    %362 = vmatprep.subr.bf16.mxu0 0
    %363 = vmatpush1.bf16.msra.mxu0 0
    %364 = vmatprep.subr.bf16.mxu0 0
    %365 = vmatpush1.bf16.msra.mxu0 0
    %366 = vmatprep.subr.bf16.mxu0 %v317
    %367 = vmatpush1.bf16.msra.mxu0 %v314
    %368 = vmatprep.subr.bf16.mxu0 %v291
    %369 = vmatpush1.bf16.msra.mxu0 %v290
    %370 = vmatprep.subr.bf16.mxu0 %v287
    %371 = vmatpush1.bf16.msra.mxu0 %v286
    %372 = vmatprep.subr.bf16.mxu0 %v283
    %373 = vmatpush1.bf16.msra.mxu0 %v282
    %374 = vmatprep.subr.bf16.mxu0 %v279
    %375 = vmatpush1.bf16.msra.mxu0 %v278
    %376 = vmatprep.subr.bf16.mxu0 0
    %377 = vmatpush2.bf16.msra.mxu0 0
    %378 = vmatprep.subr.bf16.mxu0 0
    %379 = vmatpush2.bf16.msra.mxu0 0
    %380 = vmatprep.subr.bf16.mxu0 0
    %381 = vmatpush2.bf16.msra.mxu0 0
    %382 = vmatprep.subr.bf16.mxu0 0
    %383 = vmatpush2.bf16.msra.mxu0 0
    %384 = vmatprep.subr.bf16.mxu0 0
    %385 = vmatpush2.bf16.msra.mxu0 0
    %386 = vmatprep.subr.bf16.mxu0 0
    %387 = vmatpush2.bf16.msra.mxu0 0
    %388 = vmatprep.subr.bf16.mxu0 0
    %389 = vmatpush2.bf16.msra.mxu0 0
    %390 = vmatprep.subr.bf16.mxu0 0
    %391 = vmatpush2.bf16.msra.mxu0 0
    %392 = vmatprep.mubr.bf16.mxu0 0
    %393 = vmatmul.mubr.bf16.gmra.mxu0 %v304
    %v394 = vpop.f32.mrf.mxu0
    %v395 = vadd.f32 %v300, %v394
    %v396 = vpop.f32.mrf.mxu0
    %v397 = vadd.f32 %v300, %v396
    %v398 = vpop.f32.mrf.mxu0
    %v399 = vpop.f32.mrf.mxu0
    %400 = vdwg.mxu0
    %vm401 = vcmp.gt.f32.partialorder %v354, 0.0
    %vm402 = vcmp.gt.f32.partialorder %v356, 0.0
    %vm403 = vcmp.gt.f32.partialorder %v395, 0.0
    %vm404 = vcmp.gt.f32.partialorder %v397, 0.0
    %v405 = vmul.f32 %v354, 0.01
    %v406 = vmul.f32 %v356, 0.01
    %v407 = vmul.f32 %v395, 0.01
    %v408 = vmul.f32 %v397, 0.01
    %v409 = vsel %vm401, %v354, %v405
    %v410 = vsel %vm402, %v356, %v406
    %v411 = vsel %vm403, %v395, %v407
    %v412 = vsel %vm404, %v397, %v408
    %v413 = vld [vmem:[%s4] sm:$0xf]
    %415 = vrot.lane.b32.xlu0 %v412, 17
    %v416 = vpop.permute.xlu0 %415
    %421 = vrot.lane.b32.xlu0 %v409, 17
    %v422 = vpop.permute.xlu0 %421
    %423 = vrot.lane.b32.xlu0 %v410, 17
    %v424 = vpop.permute.xlu0 %423
    %425 = vrot.lane.b32.xlu0 %v411, 17
    %v426 = vpop.permute.xlu0 %425
    %v427 = vsel %vm105, %v422, %v424
    %v428 = vsel %vm105, %v424, %v426
    %v429 = vsel %vm105, %v426, %v416
    %v434 = vsel %vm105, %v416, %v422
    %435 = vrot.lane.b32.xlu0 %v412, 16
    %v436 = vpop.permute.xlu0 %435
    %438 = vrot.lane.b32.xlu0 %v409, 16
    %v439 = vpop.permute.xlu0 %438
    %440 = vrot.lane.b32.xlu0 %v410, 16
    %v441 = vpop.permute.xlu0 %440
    %442 = vrot.lane.b32.xlu0 %v411, 16
    %v443 = vpop.permute.xlu0 %442
    %v444 = vsel %vm123, %v439, %v441
    %v445 = vsel %vm123, %v441, %v443
    %v446 = vsel %vm123, %v443, %v436
    %v451 = vsel %vm123, %v436, %v439
    %452 = vrot.lane.b32.xlu0 %v412, 15
    %v453 = vpop.permute.xlu0 %452
    %455 = vrot.lane.b32.xlu0 %v409, 15
    %v456 = vpop.permute.xlu0 %455
    %457 = vrot.lane.b32.xlu0 %v410, 15
    %v458 = vpop.permute.xlu0 %457
    %459 = vrot.lane.b32.xlu0 %v411, 15
    %v460 = vpop.permute.xlu0 %459
    %v461 = vsel %vm141, %v456, %v458
    %v462 = vsel %vm141, %v458, %v460
    %v463 = vsel %vm141, %v460, %v453
    %v468 = vsel %vm141, %v453, %v456
    %469 = vrot.lane.b32.xlu0 %v412, 1
    %v470 = vpop.permute.xlu0 %469
    %472 = vrot.lane.b32.xlu0 %v409, 1
    %v473 = vpop.permute.xlu0 %472
    %474 = vrot.lane.b32.xlu0 %v410, 1
    %v475 = vpop.permute.xlu0 %474
    %476 = vrot.lane.b32.xlu0 %v411, 1
    %v477 = vpop.permute.xlu0 %476
    %v478 = vsel %vm159, %v473, %v475
    %v479 = vsel %vm159, %v475, %v477
    %v480 = vsel %vm159, %v477, %v470
    %v485 = vsel %vm159, %v470, %v473
    %486 = vrot.lane.b32.xlu0 %v409, 127
    %v487 = vpop.permute.xlu0 %486
    %488 = vrot.lane.b32.xlu0 %v410, 127
    %v489 = vpop.permute.xlu0 %488
    %490 = vrot.lane.b32.xlu0 %v411, 127
    %v491 = vpop.permute.xlu0 %490
    %492 = vrot.lane.b32.xlu0 %v412, 127
    %v493 = vpop.permute.xlu0 %492
    %v494 = vsel %vm176, %v487, %v489
    %v495 = vsel %vm176, %v489, %v491
    %v496 = vsel %vm176, %v491, %v493
    %v502 = vsel %vm176, %v493, %v487
    %503 = vrot.lane.b32.xlu0 %v409, 113
    %v504 = vpop.permute.xlu0 %503
    %505 = vrot.lane.b32.xlu0 %v410, 113
    %v506 = vpop.permute.xlu0 %505
    %507 = vrot.lane.b32.xlu0 %v411, 113
    %v508 = vpop.permute.xlu0 %507
    %509 = vrot.lane.b32.xlu0 %v412, 113
    %v510 = vpop.permute.xlu0 %509
    %v511 = vsel %vm194, %v504, %v506
    %v512 = vsel %vm194, %v506, %v508
    %v513 = vsel %vm194, %v508, %v510
    %v519 = vsel %vm194, %v510, %v504
    %520 = vrot.lane.b32.xlu0 %v409, 112
    %v521 = vpop.permute.xlu0 %520
    %522 = vrot.lane.b32.xlu0 %v410, 112
    %v523 = vpop.permute.xlu0 %522
    %524 = vrot.lane.b32.xlu0 %v411, 112
    %v525 = vpop.permute.xlu0 %524
    %526 = vrot.lane.b32.xlu0 %v412, 112
    %v527 = vpop.permute.xlu0 %526
    %v528 = vsel %vm212, %v521, %v523
    %v529 = vsel %vm212, %v523, %v525
    %v530 = vsel %vm212, %v525, %v527
    %v536 = vsel %vm212, %v527, %v521
    %537 = vrot.lane.b32.xlu0 %v409, 111
    %v538 = vpop.permute.xlu0 %537
    %539 = vrot.lane.b32.xlu0 %v410, 111
    %v540 = vpop.permute.xlu0 %539
    %541 = vrot.lane.b32.xlu0 %v411, 111
    %v542 = vpop.permute.xlu0 %541
    %543 = vrot.lane.b32.xlu0 %v412, 111
    %v544 = vpop.permute.xlu0 %543
    %v545 = vsel %vm230, %v538, %v540
    %v546 = vsel %vm230, %v540, %v542
    %v547 = vsel %vm230, %v542, %v544
    %v553 = vsel %vm230, %v544, %v538
    %v554 = vmul.f32 %v434, %v55
    %v555 = vmul.f32 %v427, %v56
    %v556 = vmul.f32 %v428, %v57
    %v557 = vmul.f32 %v429, %v58
    %v558 = vmul.f32 %v451, %v59
    %v559 = vmul.f32 %v444, %v60
    %v560 = vmul.f32 %v445, %v61
    %v561 = vmul.f32 %v446, %v62
    %v562 = vmul.f32 %v468, %v63
    %v563 = vmul.f32 %v461, %v64
    %v564 = vmul.f32 %v462, %v65
    %v565 = vmul.f32 %v463, %v66
    %v566 = vmul.f32 %v485, %v67
    %v567 = vmul.f32 %v478, %v68
    %v568 = vmul.f32 %v479, %v69
    %v569 = vmul.f32 %v480, %v70
    %v570 = vmul.f32 %v409, %v71
    %v571 = vmul.f32 %v410, %v72
    %v572 = vmul.f32 %v411, %v73
    %v573 = vmul.f32 %v412, %v74
    %v574 = vmul.f32 %v494, %v75
    %v575 = vmul.f32 %v495, %v76
    %v576 = vmul.f32 %v496, %v77
    %v577 = vmul.f32 %v502, %v78
    %v578 = vmul.f32 %v511, %v79
    %v579 = vmul.f32 %v512, %v80
    %v580 = vmul.f32 %v513, %v81
    %v581 = vmul.f32 %v519, %v82
    %v582 = vmul.f32 %v528, %v83
    %v583 = vmul.f32 %v529, %v84
    %v584 = vmul.f32 %v530, %v85
    %v585 = vmul.f32 %v536, %v86
    %v586 = vmul.f32 %v545, %v87
    %v587 = vmul.f32 %v546, %v88
    %v588 = vmul.f32 %v547, %v89
    %v589 = vmul.f32 %v553, %v90
    %v590 = vpack.c.bf16 %v558, %v554
    %v591 = vpack.c.bf16 %v559, %v555
    %v592 = vpack.c.bf16 %v560, %v556
    %v593 = vpack.c.bf16 %v561, %v557
    %v594 = vpack.c.bf16 %v566, %v562
    %v595 = vpack.c.bf16 %v567, %v563
    %v596 = vpack.c.bf16 %v568, %v564
    %v597 = vpack.c.bf16 %v569, %v565
    %v598 = vpack.c.bf16 %v574, %v570
    %v599 = vpack.c.bf16 %v575, %v571
    %v600 = vpack.c.bf16 %v576, %v572
    %v601 = vpack.c.bf16 %v577, %v573
    %v602 = vpack.c.bf16 %v582, %v578
    %v603 = vpack.c.bf16 %v583, %v579
    %v604 = vpack.c.bf16 %v584, %v580
    %v605 = vpack.c.bf16 %v585, %v581
    %v606 = vpack.c.bf16 %v586, %v586
    %v607 = vpack.c.bf16 %v587, %v587
    %v608 = vpack.c.bf16 %v588, %v588
    %v609 = vpack.c.bf16 %v589, %v589
    %v610 = vld [vmem:[%s5] sm:$0xff]
    %612 = vset.pattern.permute.xlu0 0
    %613 = vperm.xlu0 %612, %v610
    %v614 = vpop.permute.xlu0 %613
    %v617 = vsel %vm302, %v413, 0
    %v620 = vsel %vm306, %v606, 0
    %v623 = vsel %vm306, %v607, 0
    %v626 = vsel %vm306, %v608, 0
    %v629 = vsel %vm306, %v609, 0
    %631 = vmatprep.subr.bf16.mxu0 0
    %632 = vmatpush1.bf16.msra.mxu0 0
    %633 = vmatprep.subr.bf16.mxu0 0
    %634 = vmatpush1.bf16.msra.mxu0 0
    %635 = vmatprep.subr.bf16.mxu0 0
    %636 = vmatpush1.bf16.msra.mxu0 0
    %637 = vmatprep.subr.bf16.mxu0 %v623
    %638 = vmatpush1.bf16.msra.mxu0 %v620
    %639 = vmatprep.subr.bf16.mxu0 %v603
    %640 = vmatpush1.bf16.msra.mxu0 %v602
    %641 = vmatprep.subr.bf16.mxu0 %v599
    %642 = vmatpush1.bf16.msra.mxu0 %v598
    %643 = vmatprep.subr.bf16.mxu0 %v595
    %644 = vmatpush1.bf16.msra.mxu0 %v594
    %645 = vmatprep.subr.bf16.mxu0 %v591
    %646 = vmatpush1.bf16.msra.mxu0 %v590
    %647 = vmatprep.subr.bf16.mxu0 0
    %648 = vmatpush2.bf16.msra.mxu0 0
    %649 = vmatprep.subr.bf16.mxu0 0
    %650 = vmatpush2.bf16.msra.mxu0 0
    %651 = vmatprep.subr.bf16.mxu0 0
    %652 = vmatpush2.bf16.msra.mxu0 0
    %653 = vmatprep.subr.bf16.mxu0 0
    %654 = vmatpush2.bf16.msra.mxu0 0
    %655 = vmatprep.subr.bf16.mxu0 0
    %656 = vmatpush2.bf16.msra.mxu0 0
    %657 = vmatprep.subr.bf16.mxu0 0
    %658 = vmatpush2.bf16.msra.mxu0 0
    %659 = vmatprep.subr.bf16.mxu0 0
    %660 = vmatpush2.bf16.msra.mxu0 0
    %661 = vmatprep.subr.bf16.mxu0 0
    %662 = vmatpush2.bf16.msra.mxu0 0
    %663 = vmatprep.mubr.bf16.mxu0 0
    %664 = vmatmul.mubr.bf16.gmra.mxu0 %v617
    %v665 = vpop.f32.mrf.mxu0
    %v666 = vadd.f32 %v614, %v665
    %v667 = vpop.f32.mrf.mxu0
    %v668 = vadd.f32 %v614, %v667
    %v669 = vpop.f32.mrf.mxu0
    %v670 = vpop.f32.mrf.mxu0
    %671 = vdwg.mxu0
    %672 = vmatprep.subr.bf16.mxu0 0
    %673 = vmatpush1.bf16.msra.mxu0 0
    %674 = vmatprep.subr.bf16.mxu0 0
    %675 = vmatpush1.bf16.msra.mxu0 0
    %676 = vmatprep.subr.bf16.mxu0 0
    %677 = vmatpush1.bf16.msra.mxu0 0
    %678 = vmatprep.subr.bf16.mxu0 %v629
    %679 = vmatpush1.bf16.msra.mxu0 %v626
    %680 = vmatprep.subr.bf16.mxu0 %v605
    %681 = vmatpush1.bf16.msra.mxu0 %v604
    %682 = vmatprep.subr.bf16.mxu0 %v601
    %683 = vmatpush1.bf16.msra.mxu0 %v600
    %684 = vmatprep.subr.bf16.mxu0 %v597
    %685 = vmatpush1.bf16.msra.mxu0 %v596
    %686 = vmatprep.subr.bf16.mxu0 %v593
    %687 = vmatpush1.bf16.msra.mxu0 %v592
    %688 = vmatprep.subr.bf16.mxu0 0
    %689 = vmatpush2.bf16.msra.mxu0 0
    %690 = vmatprep.subr.bf16.mxu0 0
    %691 = vmatpush2.bf16.msra.mxu0 0
    %692 = vmatprep.subr.bf16.mxu0 0
    %693 = vmatpush2.bf16.msra.mxu0 0
    %694 = vmatprep.subr.bf16.mxu0 0
    %695 = vmatpush2.bf16.msra.mxu0 0
    %696 = vmatprep.subr.bf16.mxu0 0
    %697 = vmatpush2.bf16.msra.mxu0 0
    %698 = vmatprep.subr.bf16.mxu0 0
    %699 = vmatpush2.bf16.msra.mxu0 0
    %700 = vmatprep.subr.bf16.mxu0 0
    %701 = vmatpush2.bf16.msra.mxu0 0
    %702 = vmatprep.subr.bf16.mxu0 0
    %703 = vmatpush2.bf16.msra.mxu0 0
    %704 = vmatprep.mubr.bf16.mxu0 0
    %705 = vmatmul.mubr.bf16.gmra.mxu0 %v617
    %v706 = vpop.f32.mrf.mxu0
    %v707 = vadd.f32 %v614, %v706
    %v708 = vpop.f32.mrf.mxu0
    %v709 = vadd.f32 %v614, %v708
    %v710 = vpop.f32.mrf.mxu0
    %v711 = vpop.f32.mrf.mxu0
    %712 = vdwg.mxu0
    %v713 = vadd.f32 %v666, %v51
    %v714 = vadd.f32 %v668, %v52
    %v715 = vadd.f32 %v707, %v53
    %v716 = vadd.f32 %v709, %v54
    %vm717 = vcmp.gt.f32.partialorder %v713, 0.0
    %vm718 = vcmp.gt.f32.partialorder %v714, 0.0
    %vm719 = vcmp.gt.f32.partialorder %v715, 0.0
    %vm720 = vcmp.gt.f32.partialorder %v716, 0.0
    %v721 = vmul.f32 %v713, 0.01
    %v722 = vmul.f32 %v714, 0.01
    %v723 = vmul.f32 %v715, 0.01
    %v724 = vmul.f32 %v716, 0.01
    %v725 = vsel %vm717, %v713, %v721
    %v726 = vsel %vm718, %v714, %v722
    %v727 = vsel %vm719, %v715, %v723
    %v728 = vsel %vm720, %v716, %v724
    %729 = vst [vmem:[#allocation7] sm:$0xff] %v725
    %730 = vst [vmem:[#allocation7 + $0x8] sm:$0xff] %v726
    %731 = vst [vmem:[#allocation7 + $0x10] sm:$0xff] %v727
    %732 = vst [vmem:[#allocation7 + $0x18] sm:$0xff] %v728
    // Predicated region
    $region34: #{tpu_custom_call.1} parent=1 // pred_check
      _
    $region35: #{tpu_custom_call.1} parent=1 // pred_check_branch
      %734 = sbr.rel (0) target = $region37
    $region36: #{tpu_custom_call.1} parent=1 // pred_region
      %s736 = ssub.s32 512, 512
      %737 = vsyncadd [#allocation4], %s736
      %s739 = sshll.u32 [#allocation7], 4
      %s740 = int_to_ptr.vmem [resolvable:$true] %s739
      %742 = dma.vmem_to_hbm [thread:$0]  %s740, 512, %s6, [#allocation4]
    $region37: #{tpu_custom_call.1} parent=1 // pred_fallthru
      _
    // Predicated region
    $region38: #{tpu_custom_call.1} parent=1 // pred_check
      _
    $region39: #{tpu_custom_call.1} parent=1 // pred_check_branch
      %744 = sbr.rel (0) target = $region41
    $region40: #{tpu_custom_call.1} parent=1 // pred_region
      %745 = dma.done [#allocation4], 512
    $region41: #{tpu_custom_call.1} parent=1 // pred_fallthru
      _
    %746 = vsyncpa [#allocation3], 1
    %747 = vsyncpa [#allocation6], 1
    %748 = vsyncpa [#allocation4], 1

</llo_original>
